<compile_context>
chip_gen: v6e
topology: v6e:2x2x1
jax: 0.10.0
libtpu: 0.0.40
codegen_flags: <defaults>
</compile_context>

<pallas_src>
import functools

import jax
import jax.numpy as jnp
import numpy as np
from jax.experimental import pallas as pl
from jax.experimental.pallas import tpu as pltpu


def fftnet_kernel(x_ref, cs_ref, wd_ref, cos_ref, sin_ref, beff_ref, o_ref,
                  *, seq, stack_fwd, compute_dtype):
    # x_ref:    (S, L)   batch-in-lanes slab, L = TB*D (column = t*D + d)
    # cs_ref:   (2S, S)  stacked DFT matrices [cos ; -sin]
    # wd_ref:   (L, L)   block-diagonal kron(I_TB, W^T) of the Linear filter
    # cos_ref:  (1, L)   cos(b)/S   (tiled per batch-in-lane slot)
    # sin_ref:  (1, L)   sin(b)/S
    # beff_ref: (1, L)   bias*(cos(b)-sin(b))/S
    S = seq
    f32 = jnp.float32
    cdt = compute_dtype

    x = x_ref[...]                                               # (S, L)

    # ---- Linear filter, applied once (matmul associativity), block-diag ----
    # No (S,L)<->(S*TB,D) reshape: avoids the XLU/VMEM relayout entirely.
    xw = jnp.dot(x, wd_ref[...], preferred_element_type=f32)     # (S, L) f32
    xw = xw.astype(cdt)

    # ---- forward DFT along seq ---------------------------------------------
    # Single stacked matmul when the row split at S is sublane-aligned;
    # otherwise two dots fed from ref slices (no misaligned value slice).
    if stack_fwd:
        F = jnp.dot(cs_ref[...], xw, preferred_element_type=f32)  # (2S, L)
        fr, fi = F[:S], F[S:]
    else:
        fr = jnp.dot(cs_ref[pl.ds(0, S), :], xw, preferred_element_type=f32)
        fi = jnp.dot(cs_ref[pl.ds(S, S), :], xw, preferred_element_type=f32)

    # ---- ModReLU with folded Linear bias and folded 1/S IFFT scale ---------
    #   |z| * relu(cos(angle(z)+b)) == relu(Re(z)*cos(b) - Im(z)*sin(b))
    r = jnp.maximum(fr * cos_ref[...] - fi * sin_ref[...] + beff_ref[...], 0.0)

    # ---- real part of IFFT along seq: cos block streamed from the ref ------
    o_ref[...] = jnp.dot(cs_ref[pl.ds(0, S), :], r.astype(cdt),
                         preferred_element_type=f32).astype(o_ref.dtype)


def _pick_batch_tile(batch, dim, target_lanes=512):
    """Pick the batch tile TB (a divisor of `batch`).

    Preference: lane width TB*dim a multiple of 128 (lane-dense, no masked
    stores), as wide as possible up to `target_lanes` (fills the 2x256x256
    v6e/v7x MXU and amortizes the ~0.35us/step pipeline overhead).  If no
    divisor is a multiple of 128, fall back to TB=batch (block == full lane
    extent, which is always a legal block shape)."""
    divisors = [t for t in range(1, batch + 1) if batch % t == 0]
    legal = [t for t in divisors if (t * dim) % 128 == 0]
    if not legal:
        legal = [batch]
    within = [t for t in legal if t * dim <= target_lanes]
    return max(within) if within else min(legal)


def fftnet_block(x, W, bias, b, *, batch_tile=None, matmul_dtype=jnp.float32):
    """FFTNetBlock forward.  x: (B, S, D) f32.  W, bias: Linear params
    (y = x @ W.T + bias).  b: ModReLU phase bias (D,).

    matmul_dtype=jnp.bfloat16 casts the three MXU operands (x, DFT matrix,
    block-diag filter) for ~3-4x matmul throughput on v6e/v7x; default f32
    preserves the PyTorch f32 numerics."""
    B, S, D = x.shape
    f32 = jnp.float32
    cdt = jnp.dtype(matmul_dtype)

    if batch_tile is None:
        batch_tile = _pick_batch_tile(B, D)
    assert B % batch_tile == 0
    TB = batch_tile
    L = TB * D
    n_steps = B // TB

    # ---- DFT matrices (host-side; exact integer phase reduction mod S) -----
    k = np.arange(S, dtype=np.int64)
    ang = (2.0 * np.pi / S) * np.mod(np.outer(k, k), S).astype(np.float64)
    CS = jnp.asarray(np.concatenate([np.cos(ang), -np.sin(ang)], axis=0),
                     dtype=cdt)                                  # (2S, S)

    # ---- block-diagonal filter: kron(I_TB, W^T), applied once pre-DFT ------
    Wd = jnp.kron(jnp.eye(TB, dtype=f32), W.T.astype(f32)).astype(cdt)  # (L, L)

    # ---- ModReLU constants, tiled to the batch-in-lanes layout, 1/S folded -
    cos_b = jnp.cos(b).astype(f32)
    sin_b = jnp.sin(b).astype(f32)
    inv_s = 1.0 / S
    cos_s = jnp.tile(cos_b * inv_s, TB).reshape(1, L)
    sin_s = jnp.tile(sin_b * inv_s, TB).reshape(1, L)
    beff = jnp.tile(bias.astype(f32) * (cos_b - sin_b) * inv_s, TB).reshape(1, L)

    # ---- layout plumbing: fold batch into lanes (needed while D < 128) -----
    x2 = jnp.transpose(x, (1, 0, 2)).reshape(S, B * D).astype(cdt)   # (S, B*D)

    kernel = functools.partial(fftnet_kernel, seq=S,
                               stack_fwd=(S % 8 == 0), compute_dtype=cdt)

    # ---- VMEM budget + cost estimate ---------------------------------------
    bpc = cdt.itemsize
    vmem_est = (2 * S * L * bpc          # x blocks (double buffered)
                + 2 * S * L * 4          # out blocks (double buffered)
                + 2 * S * S * bpc        # stacked DFT matrix (single buffered)
                + L * L * bpc            # block-diagonal filter
                + 3 * L * 4              # ModReLU constants
                + 6 * S * L * 4)         # in-kernel temporaries (xw, F, r)
    vmem_limit = int(min(max(2 * vmem_est, 32 << 20), 64 << 20))

    flops_per_step = 2 * S * L * L + 2 * (2 * S) * S * L + 2 * S * S * L
    cost = pl.CostEstimate(
        flops=int(flops_per_step * n_steps),
        transcendentals=0,
        bytes_accessed=int(2 * B * S * D * 4 + 2 * S * S * bpc
                           + L * L * bpc + 3 * L * 4),
    )

    def build(single_buffer_invariants):
        def const_spec(shape):
            # Grid-invariant operands: single-buffer to halve their VMEM
            # footprint (important on v7x's 64 MiB VMEM).
            if single_buffer_invariants:
                return pl.BlockSpec(shape, lambda i: (0, 0),
                                    pipeline_mode=pl.Buffered(1))
            return pl.BlockSpec(shape, lambda i: (0, 0))

        return pl.pallas_call(
            kernel,
            out_shape=jax.ShapeDtypeStruct((S, B * D), f32),
            grid_spec=pltpu.PrefetchScalarGridSpec(
                num_scalar_prefetch=0,
                grid=(n_steps,),
                in_specs=[
                    pl.BlockSpec((S, L), lambda i: (0, i)),   # x batch tile
                    const_spec((2 * S, S)),                   # stacked DFT
                    const_spec((L, L)),                       # block-diag W^T
                    const_spec((1, L)),                       # cos(b)/S
                    const_spec((1, L)),                       # sin(b)/S
                    const_spec((1, L)),                       # fused bias
                ],
                out_specs=pl.BlockSpec((S, L), lambda i: (0, i)),
            ),
            compiler_params=pltpu.CompilerParams(
                dimension_semantics=("parallel",),
                vmem_limit_bytes=vmem_limit),
            cost_estimate=cost,
        )

    try:
        out2 = build(True)(x2, CS, Wd, cos_s, sin_s, beff)
    except Exception:
        # Fallback if this JAX build rejects pipeline_mode=pl.Buffered(1).
        out2 = build(False)(x2, CS, Wd, cos_s, sin_s, beff)

    # Undo the layout plumbing: (S, B*D) -> (B, S, D).
    return out2.reshape(S, B, D).transpose(1, 0, 2)


def fftnet_block_ref(x, W, bias, b):
    """Pure-JAX reference mirroring the PyTorch forward."""
    x_fft = jnp.fft.fft(x, axis=1)
    yr = x_fft.real @ W.T + bias
    yi = x_fft.imag @ W.T + bias
    z = yr + 1j * yi
    r = jnp.abs(z) * jax.nn.relu(jnp.cos(jnp.angle(z) + b))
    return jnp.fft.ifft(r.astype(jnp.complex64), axis=1).real.astype(jnp.float32)


if __name__ == "__main__":
    # Small shapes; B=8, D=32 -> batch_tile=8, a single 256-lane-wide slab
    # (fills the 256-wide v6e/v7x MXU; no per-step overhead for this tiny case).
    B, S, D = 8, 8, 32
    key = jax.random.PRNGKey(0)
    kx, kw, kb, kmb = jax.random.split(key, 4)

    x = jax.random.normal(kx, (B, S, D), dtype=jnp.float32)

    # Deterministic params matching PyTorch shapes:
    #   nn.Linear(dim, dim): W (D, D), bias (D,), uniform(-1/sqrt(D), 1/sqrt(D))
    #   ModReLU.b: (D,), uniform(-0.1, 0.1)
    bound = 1.0 / np.sqrt(D)
    W = jax.random.uniform(kw, (D, D), jnp.float32, -bound, bound)
    bias = jax.random.uniform(kb, (D,), jnp.float32, -bound, bound)
    b = jax.random.uniform(kmb, (D,), jnp.float32, -0.1, 0.1)

    out = jax.block_until_ready(fftnet_block(x, W, bias, b))

    ref = fftnet_block_ref(x, W, bias, b)
    np.testing.assert_allclose(np.asarray(out), np.asarray(ref),
                               rtol=1e-4, atol=1e-4)
    print("KERNEL_OK")
</pallas_src>

<mosaic_0001>
module attributes {stable_mosaic.version = 11 : i64} {
  func.func @fftnet_kernel(%arg0: i32, %arg1: memref<8x256xf32, #tpu.memory_space<vmem>>, %arg2: memref<16x8xf32, #tpu.memory_space<vmem>>, %arg3: memref<256x256xf32, #tpu.memory_space<vmem>>, %arg4: memref<1x256xf32, #tpu.memory_space<vmem>>, %arg5: memref<1x256xf32, #tpu.memory_space<vmem>>, %arg6: memref<1x256xf32, #tpu.memory_space<vmem>>, %arg7: memref<8x256xf32, #tpu.memory_space<vmem>>) attributes {dimension_semantics = [#tpu.dimension_semantics<parallel>], iteration_bounds = array<i64: 1>, scalar_prefetch = 0 : i64, scratch_operands = 0 : i64, tpu.core_type = #tpu.core_type<tc>, window_params = [{transform_indices = @transform_0, window_bounds = array<i64: 8, 256>}, {pipeline_mode = #tpu.pipeline_mode<synchronous>, transform_indices = @transform_1, window_bounds = array<i64: 16, 8>}, {pipeline_mode = #tpu.pipeline_mode<synchronous>, transform_indices = @transform_2, window_bounds = array<i64: 256, 256>}, {pipeline_mode = #tpu.pipeline_mode<synchronous>, transform_indices = @transform_3, window_bounds = array<i64: 1, 256>}, {pipeline_mode = #tpu.pipeline_mode<synchronous>, transform_indices = @transform_4, window_bounds = array<i64: 1, 256>}, {pipeline_mode = #tpu.pipeline_mode<synchronous>, transform_indices = @transform_5, window_bounds = array<i64: 1, 256>}, {transform_indices = @transform_6, window_bounds = array<i64: 8, 256>}]} {
    %c0 = arith.constant 0 : index
    %c0_0 = arith.constant 0 : index
    %0 = vector.load %arg1[%c0, %c0_0] : memref<8x256xf32, #tpu.memory_space<vmem>>, vector<8x256xf32>
    %c0_1 = arith.constant 0 : index
    %c0_2 = arith.constant 0 : index
    %1 = vector.load %arg3[%c0_1, %c0_2] : memref<256x256xf32, #tpu.memory_space<vmem>>, vector<256x256xf32>
    %cst = arith.constant dense<0.000000e+00> : vector<8x256xf32>
    %2 = tpu.matmul %0, %1, %cst {dimension_numbers = #tpu.dot_dimension_numbers<[1], [0], [0], [1], [0, 0, 1, 1], [], []>} : vector<8x256xf32>, vector<256x256xf32>, vector<8x256xf32> -> vector<8x256xf32>
    %c0_3 = arith.constant 0 : index
    %c0_4 = arith.constant 0 : index
    %3 = vector.load %arg2[%c0_3, %c0_4] : memref<16x8xf32, #tpu.memory_space<vmem>>, vector<16x8xf32>
    %cst_5 = arith.constant dense<0.000000e+00> : vector<16x256xf32>
    %4 = tpu.matmul %3, %2, %cst_5 {dimension_numbers = #tpu.dot_dimension_numbers<[1], [0], [0], [1], [0, 0, 1, 1], [], []>} : vector<16x8xf32>, vector<8x256xf32>, vector<16x256xf32> -> vector<16x256xf32>
    %5 = vector.extract_strided_slice %4 {offsets = [0, 0], sizes = [8, 256], strides = [1, 1]} : vector<16x256xf32> to vector<8x256xf32>
    %6 = vector.extract_strided_slice %4 {offsets = [8, 0], sizes = [8, 256], strides = [1, 1]} : vector<16x256xf32> to vector<8x256xf32>
    %c0_6 = arith.constant 0 : index
    %c0_7 = arith.constant 0 : index
    %7 = vector.load %arg4[%c0_6, %c0_7] : memref<1x256xf32, #tpu.memory_space<vmem>>, vector<1x256xf32>
    %8 = vector.broadcast %7 : vector<1x256xf32> to vector<8x256xf32>
    %9 = arith.mulf %5, %8 : vector<8x256xf32>
    %c0_8 = arith.constant 0 : index
    %c0_9 = arith.constant 0 : index
    %10 = vector.load %arg5[%c0_8, %c0_9] : memref<1x256xf32, #tpu.memory_space<vmem>>, vector<1x256xf32>
    %11 = vector.broadcast %10 : vector<1x256xf32> to vector<8x256xf32>
    %12 = arith.mulf %6, %11 : vector<8x256xf32>
    %13 = arith.subf %9, %12 : vector<8x256xf32>
    %c0_10 = arith.constant 0 : index
    %c0_11 = arith.constant 0 : index
    %14 = vector.load %arg6[%c0_10, %c0_11] : memref<1x256xf32, #tpu.memory_space<vmem>>, vector<1x256xf32>
    %15 = vector.broadcast %14 : vector<1x256xf32> to vector<8x256xf32>
    %16 = arith.addf %13, %15 : vector<8x256xf32>
    %cst_12 = arith.constant 0.000000e+00 : f32
    %17 = vector.broadcast %cst_12 : f32 to vector<8x256xf32>
    %18 = arith.maximumf %16, %17 : vector<8x256xf32>
    %c0_13 = arith.constant 0 : index
    %c0_14 = arith.constant 0 : index
    %19 = vector.load %arg2[%c0_13, %c0_14] : memref<16x8xf32, #tpu.memory_space<vmem>>, vector<8x8xf32>
    %cst_15 = arith.constant dense<0.000000e+00> : vector<8x256xf32>
    %20 = tpu.matmul %19, %18, %cst_15 {dimension_numbers = #tpu.dot_dimension_numbers<[1], [0], [0], [1], [0, 0, 1, 1], [], []>} : vector<8x8xf32>, vector<8x256xf32>, vector<8x256xf32> -> vector<8x256xf32>
    %c0_16 = arith.constant 0 : index
    %c0_17 = arith.constant 0 : index
    %21 = vector.load %arg7[%c0_16, %c0_17] : memref<8x256xf32, #tpu.memory_space<vmem>>, vector<8x256xf32>
    tpu.vector_store %arg7[%c0_16, %c0_17], %20 {strides = array<i32>} : memref<8x256xf32, #tpu.memory_space<vmem>>, vector<8x256xf32>,
    return
  }
  func.func @transform_0(%arg0: i32) -> (i32, i32) {
    %c0_i32 = arith.constant 0 : i32
    %c0_i32_0 = arith.constant 0 : i32
    return %c0_i32, %arg0 : i32, i32
  }
  func.func @transform_1(%arg0: i32) -> (i32, i32) {
    %c0_i32 = arith.constant 0 : i32
    %c0_i32_0 = arith.constant 0 : i32
    %c0_i32_1 = arith.constant 0 : i32
    return %c0_i32, %c0_i32_0 : i32, i32
  }
  func.func @transform_2(%arg0: i32) -> (i32, i32) {
    %c0_i32 = arith.constant 0 : i32
    %c0_i32_0 = arith.constant 0 : i32
    %c0_i32_1 = arith.constant 0 : i32
    return %c0_i32, %c0_i32_0 : i32, i32
  }
  func.func @transform_3(%arg0: i32) -> (i32, i32) {
    %c0_i32 = arith.constant 0 : i32
    %c0_i32_0 = arith.constant 0 : i32
    %c0_i32_1 = arith.constant 0 : i32
    return %c0_i32, %c0_i32_0 : i32, i32
  }
  func.func @transform_4(%arg0: i32) -> (i32, i32) {
    %c0_i32 = arith.constant 0 : i32
    %c0_i32_0 = arith.constant 0 : i32
    %c0_i32_1 = arith.constant 0 : i32
    return %c0_i32, %c0_i32_0 : i32, i32
  }
  func.func @transform_5(%arg0: i32) -> (i32, i32) {
    %c0_i32 = arith.constant 0 : i32
    %c0_i32_0 = arith.constant 0 : i32
    %c0_i32_1 = arith.constant 0 : i32
    return %c0_i32, %c0_i32_0 : i32, i32
  }
  func.func @transform_6(%arg0: i32) -> (i32, i32) {
    %c0_i32 = arith.constant 0 : i32
    %c0_i32_0 = arith.constant 0 : i32
    return %c0_i32, %arg0 : i32, i32
  }
}

module attributes {stable_mosaic.version = 11 : i64} {
  func.func @fftnet_kernel(%arg0: i32, %arg1: memref<8x256xf32, #tpu.memory_space<vmem>>, %arg2: memref<16x8xf32, #tpu.memory_space<vmem>>, %arg3: memref<256x256xf32, #tpu.memory_space<vmem>>, %arg4: memref<1x256xf32, #tpu.memory_space<vmem>>, %arg5: memref<1x256xf32, #tpu.memory_space<vmem>>, %arg6: memref<1x256xf32, #tpu.memory_space<vmem>>, %arg7: memref<8x256xf32, #tpu.memory_space<vmem>>) attributes {dimension_semantics = [#tpu.dimension_semantics<parallel>], iteration_bounds = array<i64: 1>, scalar_prefetch = 0 : i64, scratch_operands = 0 : i64, tpu.core_type = #tpu.core_type<tc>, window_params = [{transform_indices = @transform_0, window_bounds = array<i64: 8, 256>}, {pipeline_mode = #tpu.pipeline_mode<synchronous>, transform_indices = @transform_1, window_bounds = array<i64: 16, 8>}, {pipeline_mode = #tpu.pipeline_mode<synchronous>, transform_indices = @transform_2, window_bounds = array<i64: 256, 256>}, {pipeline_mode = #tpu.pipeline_mode<synchronous>, transform_indices = @transform_3, window_bounds = array<i64: 1, 256>}, {pipeline_mode = #tpu.pipeline_mode<synchronous>, transform_indices = @transform_4, window_bounds = array<i64: 1, 256>}, {pipeline_mode = #tpu.pipeline_mode<synchronous>, transform_indices = @transform_5, window_bounds = array<i64: 1, 256>}, {transform_indices = @transform_6, window_bounds = array<i64: 8, 256>}]} {
    %c0 = arith.constant 0 : index
    %c0_0 = arith.constant 0 : index
    %0 = vector.load %arg1[%c0, %c0_0] : memref<8x256xf32, #tpu.memory_space<vmem>>, vector<8x256xf32>
    %c0_1 = arith.constant 0 : index
    %c0_2 = arith.constant 0 : index
    %1 = vector.load %arg3[%c0_1, %c0_2] : memref<256x256xf32, #tpu.memory_space<vmem>>, vector<256x256xf32>
    %cst = arith.constant dense<0.000000e+00> : vector<8x256xf32>
    %2 = tpu.matmul %0, %1, %cst {dimension_numbers = #tpu.dot_dimension_numbers<[1], [0], [0], [1], [0, 0, 1, 1], [], []>} : vector<8x256xf32>, vector<256x256xf32>, vector<8x256xf32> -> vector<8x256xf32>
    %c0_3 = arith.constant 0 : index
    %c0_4 = arith.constant 0 : index
    %3 = vector.load %arg2[%c0_3, %c0_4] : memref<16x8xf32, #tpu.memory_space<vmem>>, vector<16x8xf32>
    %cst_5 = arith.constant dense<0.000000e+00> : vector<16x256xf32>
    %4 = tpu.matmul %3, %2, %cst_5 {dimension_numbers = #tpu.dot_dimension_numbers<[1], [0], [0], [1], [0, 0, 1, 1], [], []>} : vector<16x8xf32>, vector<8x256xf32>, vector<16x256xf32> -> vector<16x256xf32>
    %5 = vector.extract_strided_slice %4 {offsets = [0, 0], sizes = [8, 256], strides = [1, 1]} : vector<16x256xf32> to vector<8x256xf32>
    %6 = vector.extract_strided_slice %4 {offsets = [8, 0], sizes = [8, 256], strides = [1, 1]} : vector<16x256xf32> to vector<8x256xf32>
    %c0_6 = arith.constant 0 : index
    %c0_7 = arith.constant 0 : index
    %7 = vector.load %arg4[%c0_6, %c0_7] : memref<1x256xf32, #tpu.memory_space<vmem>>, vector<1x256xf32>
    %8 = vector.broadcast %7 : vector<1x256xf32> to vector<8x256xf32>
    %9 = arith.mulf %5, %8 : vector<8x256xf32>
    %c0_8 = arith.constant 0 : index
    %c0_9 = arith.constant 0 : index
    %10 = vector.load %arg5[%c0_8, %c0_9] : memref<1x256xf32, #tpu.memory_space<vmem>>, vector<1x256xf32>
    %11 = vector.broadcast %10 : vector<1x256xf32> to vector<8x256xf32>
    %12 = arith.mulf %6, %11 : vector<8x256xf32>
    %13 = arith.subf %9, %12 : vector<8x256xf32>
    %c0_10 = arith.constant 0 : index
    %c0_11 = arith.constant 0 : index
    %14 = vector.load %arg6[%c0_10, %c0_11] : memref<1x256xf32, #tpu.memory_space<vmem>>, vector<1x256xf32>
    %15 = vector.broadcast %14 : vector<1x256xf32> to vector<8x256xf32>
    %16 = arith.addf %13, %15 : vector<8x256xf32>
    %cst_12 = arith.constant 0.000000e+00 : f32
    %17 = vector.broadcast %cst_12 : f32 to vector<8x256xf32>
    %18 = arith.maximumf %16, %17 : vector<8x256xf32>
    %c0_13 = arith.constant 0 : index
    %c0_14 = arith.constant 0 : index
    %19 = vector.load %arg2[%c0_13, %c0_14] : memref<16x8xf32, #tpu.memory_space<vmem>>, vector<8x8xf32>
    %cst_15 = arith.constant dense<0.000000e+00> : vector<8x256xf32>
    %20 = tpu.matmul %19, %18, %cst_15 {dimension_numbers = #tpu.dot_dimension_numbers<[1], [0], [0], [1], [0, 0, 1, 1], [], []>} : vector<8x8xf32>, vector<8x256xf32>, vector<8x256xf32> -> vector<8x256xf32>
    %c0_16 = arith.constant 0 : index
    %c0_17 = arith.constant 0 : index
    %21 = vector.load %arg7[%c0_16, %c0_17] : memref<8x256xf32, #tpu.memory_space<vmem>>, vector<8x256xf32>
    tpu.vector_store %arg7[%c0_16, %c0_17], %20 {strides = array<i32>} : memref<8x256xf32, #tpu.memory_space<vmem>>, vector<8x256xf32>,
    return
  }
  func.func @transform_0(%arg0: i32) -> (i32, i32) {
    %c0_i32 = arith.constant 0 : i32
    %c0_i32_0 = arith.constant 0 : i32
    return %c0_i32, %arg0 : i32, i32
  }
  func.func @transform_1(%arg0: i32) -> (i32, i32) {
    %c0_i32 = arith.constant 0 : i32
    %c0_i32_0 = arith.constant 0 : i32
    %c0_i32_1 = arith.constant 0 : i32
    return %c0_i32, %c0_i32_0 : i32, i32
  }
  func.func @transform_2(%arg0: i32) -> (i32, i32) {
    %c0_i32 = arith.constant 0 : i32
    %c0_i32_0 = arith.constant 0 : i32
    %c0_i32_1 = arith.constant 0 : i32
    return %c0_i32, %c0_i32_0 : i32, i32
  }
  func.func @transform_3(%arg0: i32) -> (i32, i32) {
    %c0_i32 = arith.constant 0 : i32
    %c0_i32_0 = arith.constant 0 : i32
    %c0_i32_1 = arith.constant 0 : i32
    return %c0_i32, %c0_i32_0 : i32, i32
  }
  func.func @transform_4(%arg0: i32) -> (i32, i32) {
    %c0_i32 = arith.constant 0 : i32
    %c0_i32_0 = arith.constant 0 : i32
    %c0_i32_1 = arith.constant 0 : i32
    return %c0_i32, %c0_i32_0 : i32, i32
  }
  func.func @transform_5(%arg0: i32) -> (i32, i32) {
    %c0_i32 = arith.constant 0 : i32
    %c0_i32_0 = arith.constant 0 : i32
    %c0_i32_1 = arith.constant 0 : i32
    return %c0_i32, %c0_i32_0 : i32, i32
  }
  func.func @transform_6(%arg0: i32) -> (i32, i32) {
    %c0_i32 = arith.constant 0 : i32
    %c0_i32_0 = arith.constant 0 : i32
    return %c0_i32, %arg0 : i32, i32
  }
}

</mosaic_0001>

<llo_original>
// kernel: tpu_custom_call.1
$region0: #{tpu_custom_call.1}
  #allocation0 [shape = 'u32[]', space=smem, size = 0x4, offset = 0x4, fixed_abs, tag = 'smem constant byte address 0x4 - core index']
  #allocation1 [shape = 'u32[144,128]{1,0:T(1,128)}', space=vmem, size = 0x12000, scoped, tag = 'internal scratch']
  %s0 = inlined_call_operand.vmem [shape: f32[8,256], index: 0, kind: input, shape index: {}]
  %s1 = inlined_call_operand.vmem [shape: f32[16,8], index: 1, kind: input, shape index: {}]
  %s2 = inlined_call_operand.hbm [shape: f32[256,256], index: 2, kind: input, shape index: {}]
  %s3 = inlined_call_operand.vmem [shape: f32[1,256], index: 3, kind: input, shape index: {}]
  %s4 = inlined_call_operand.vmem [shape: f32[1,256], index: 4, kind: input, shape index: {}]
  %s5 = inlined_call_operand.vmem [shape: f32[1,256], index: 5, kind: input, shape index: {}]
  %s6 = inlined_call_operand.hbm [shape: f32[8,256], index: 6, kind: output, shape index: {}]
  %s7 = sld [smem:[#allocation0]]
  $region38: #{tpu_custom_call.1} parent=0
    _
  %s9 = ssub.s32 1, %s7
  %s10 = scalar_select 0, %s9, %s7
  $region1: #{tpu_custom_call.1} parent=0
    #allocation2 [shape = 'u8[262144]{0}', space=vmem, size = 0x40000, scoped, tag = 'input window, operand 2, single buffered']
    #allocation3 [shape = 's32[1]{0}', space=sflag, size = 0x4, scoped, tag = 'scoped memory for tpu_custom_call.1']
    #allocation4 [shape = 's32[1]{0}', space=sflag, size = 0x4, scoped, tag = 'scoped memory for tpu_custom_call.1']
    #allocation5 [shape = 'u8[8192]{0}', space=vmem, size = 0x2000, scoped, tag = 'output window, operand 0, single buffered']
    %11 = vsyncpa [#allocation3], 0
    %12 = vsyncpa [#allocation4], 0
    // Predicated region
    $region2: #{tpu_custom_call.1} parent=1 // pred_check
      _
    $region3: #{tpu_custom_call.1} parent=1 // pred_check_branch
      %14 = sbr.rel (0) target = $region5
    $region4: #{tpu_custom_call.1} parent=1 // pred_region
      _
    $region5: #{tpu_custom_call.1} parent=1 // pred_fallthru
      _
    // Predicated region
    $region6: #{tpu_custom_call.1} parent=1 // pred_check
      _
    $region7: #{tpu_custom_call.1} parent=1 // pred_check_branch
      %16 = sbr.rel (0) target = $region9
    $region8: #{tpu_custom_call.1} parent=1 // pred_region
      _
    $region9: #{tpu_custom_call.1} parent=1 // pred_fallthru
      _
    // Predicated region
    $region10: #{tpu_custom_call.1} parent=1 // pred_check
      _
    $region11: #{tpu_custom_call.1} parent=1 // pred_check_branch
      %18 = sbr.rel (0) target = $region13
    $region12: #{tpu_custom_call.1} parent=1 // pred_region
      %s20 = ssub.s32 8192, 8192
      %21 = vsyncadd [#allocation3], %s20
      %s22 = sshll.u32 [#allocation2], 4
      %s23 = int_to_ptr.vmem [resolvable:$true] %s22
      %28 = dma.hbm_to_vmem [thread:$0]  %s2, 8192, %s23, [#allocation3], 256, 256, 16
    $region13: #{tpu_custom_call.1} parent=1 // pred_fallthru
      _
    // Predicated region
    $region14: #{tpu_custom_call.1} parent=1 // pred_check
      _
    $region15: #{tpu_custom_call.1} parent=1 // pred_check_branch
      %30 = sbr.rel (0) target = $region17
    $region16: #{tpu_custom_call.1} parent=1 // pred_region
      _
    $region17: #{tpu_custom_call.1} parent=1 // pred_fallthru
      _
    // Predicated region
    $region18: #{tpu_custom_call.1} parent=1 // pred_check
      _
    $region19: #{tpu_custom_call.1} parent=1 // pred_check_branch
      %32 = sbr.rel (0) target = $region21
    $region20: #{tpu_custom_call.1} parent=1 // pred_region
      _
    $region21: #{tpu_custom_call.1} parent=1 // pred_fallthru
      _
    // Predicated region
    $region22: #{tpu_custom_call.1} parent=1 // pred_check
      _
    $region23: #{tpu_custom_call.1} parent=1 // pred_check_branch
      %34 = sbr.rel (0) target = $region25
    $region24: #{tpu_custom_call.1} parent=1 // pred_region
      _
    $region25: #{tpu_custom_call.1} parent=1 // pred_fallthru
      _
    // Predicated region
    $region26: #{tpu_custom_call.1} parent=1 // pred_check
      _
    $region27: #{tpu_custom_call.1} parent=1 // pred_check_branch
      %36 = sbr.rel (0) target = $region29
    $region28: #{tpu_custom_call.1} parent=1 // pred_region
      %37 = dma.done [#allocation3], 8192
    $region29: #{tpu_custom_call.1} parent=1 // pred_fallthru
      _
    %v38 = vld [vmem:[%s0] sm:$0xff]
    %v39 = vld [vmem:[%s0 + $0x8] sm:$0xff]
    %v40 = vld [vmem:[#allocation2] sm:$0xff]
    %v41 = vld [vmem:[#allocation2 + $0x8] sm:$0xff]
    %v42 = vld [vmem:[#allocation2 + $0x10] sm:$0xff]
    %v43 = vld [vmem:[#allocation2 + $0x18] sm:$0xff]
    %v44 = vld [vmem:[#allocation2 + $0x20] sm:$0xff]
    %v45 = vld [vmem:[#allocation2 + $0x28] sm:$0xff]
    %v46 = vld [vmem:[#allocation2 + $0x30] sm:$0xff]
    %v47 = vld [vmem:[#allocation2 + $0x38] sm:$0xff]
    %v48 = vld [vmem:[#allocation2 + $0x40] sm:$0xff]
    %v49 = vld [vmem:[#allocation2 + $0x48] sm:$0xff]
    %v50 = vld [vmem:[#allocation2 + $0x50] sm:$0xff]
    %v51 = vld [vmem:[#allocation2 + $0x58] sm:$0xff]
    %v52 = vld [vmem:[#allocation2 + $0x60] sm:$0xff]
    %v53 = vld [vmem:[#allocation2 + $0x68] sm:$0xff]
    %v54 = vld [vmem:[#allocation2 + $0x70] sm:$0xff]
    %v55 = vld [vmem:[#allocation2 + $0x78] sm:$0xff]
    %v56 = vld [vmem:[#allocation2 + $0x80] sm:$0xff]
    %v57 = vld [vmem:[#allocation2 + $0x88] sm:$0xff]
    %v58 = vld [vmem:[#allocation2 + $0x90] sm:$0xff]
    %v59 = vld [vmem:[#allocation2 + $0x98] sm:$0xff]
    %v60 = vld [vmem:[#allocation2 + $0xa0] sm:$0xff]
    %v61 = vld [vmem:[#allocation2 + $0xa8] sm:$0xff]
    %v62 = vld [vmem:[#allocation2 + $0xb0] sm:$0xff]
    %v63 = vld [vmem:[#allocation2 + $0xb8] sm:$0xff]
    %v64 = vld [vmem:[#allocation2 + $0xc0] sm:$0xff]
    %v65 = vld [vmem:[#allocation2 + $0xc8] sm:$0xff]
    %v66 = vld [vmem:[#allocation2 + $0xd0] sm:$0xff]
    %v67 = vld [vmem:[#allocation2 + $0xd8] sm:$0xff]
    %v68 = vld [vmem:[#allocation2 + $0xe0] sm:$0xff]
    %v69 = vld [vmem:[#allocation2 + $0xe8] sm:$0xff]
    %v70 = vld [vmem:[#allocation2 + $0xf0] sm:$0xff]
    %v71 = vld [vmem:[#allocation2 + $0xf8] sm:$0xff]
    %v72 = vld [vmem:[#allocation2 + $0x100] sm:$0xff]
    %v73 = vld [vmem:[#allocation2 + $0x108] sm:$0xff]
    %v74 = vld [vmem:[#allocation2 + $0x110] sm:$0xff]
    %v75 = vld [vmem:[#allocation2 + $0x118] sm:$0xff]
    %v76 = vld [vmem:[#allocation2 + $0x120] sm:$0xff]
    %v77 = vld [vmem:[#allocation2 + $0x128] sm:$0xff]
    %v78 = vld [vmem:[#allocation2 + $0x130] sm:$0xff]
    %v79 = vld [vmem:[#allocation2 + $0x138] sm:$0xff]
    %v80 = vld [vmem:[#allocation2 + $0x140] sm:$0xff]
    %v81 = vld [vmem:[#allocation2 + $0x148] sm:$0xff]
    %v82 = vld [vmem:[#allocation2 + $0x150] sm:$0xff]
    %v83 = vld [vmem:[#allocation2 + $0x158] sm:$0xff]
    %v84 = vld [vmem:[#allocation2 + $0x160] sm:$0xff]
    %v85 = vld [vmem:[#allocation2 + $0x168] sm:$0xff]
    %v86 = vld [vmem:[#allocation2 + $0x170] sm:$0xff]
    %v87 = vld [vmem:[#allocation2 + $0x178] sm:$0xff]
    %v88 = vld [vmem:[#allocation2 + $0x180] sm:$0xff]
    %v89 = vld [vmem:[#allocation2 + $0x188] sm:$0xff]
    %v90 = vld [vmem:[#allocation2 + $0x190] sm:$0xff]
    %v91 = vld [vmem:[#allocation2 + $0x198] sm:$0xff]
    %v92 = vld [vmem:[#allocation2 + $0x1a0] sm:$0xff]
    %v93 = vld [vmem:[#allocation2 + $0x1a8] sm:$0xff]
    %v94 = vld [vmem:[#allocation2 + $0x1b0] sm:$0xff]
    %v95 = vld [vmem:[#allocation2 + $0x1b8] sm:$0xff]
    %v96 = vld [vmem:[#allocation2 + $0x1c0] sm:$0xff]
    %v97 = vld [vmem:[#allocation2 + $0x1c8] sm:$0xff]
    %v98 = vld [vmem:[#allocation2 + $0x1d0] sm:$0xff]
    %v99 = vld [vmem:[#allocation2 + $0x1d8] sm:$0xff]
    %v100 = vld [vmem:[#allocation2 + $0x1e0] sm:$0xff]
    %v101 = vld [vmem:[#allocation2 + $0x1e8] sm:$0xff]
    %v102 = vld [vmem:[#allocation2 + $0x1f0] sm:$0xff]
    %v103 = vld [vmem:[#allocation2 + $0x1f8] sm:$0xff]
    %104 = vmatprep.subr.mxu0 %v71
    %105 = vmatpush1.msra.mxu0 %v70
    %106 = vmatprep.subr.mxu0 %v69
    %107 = vmatpush1.msra.mxu0 %v68
    %108 = vmatprep.subr.mxu0 %v67
    %109 = vmatpush1.msra.mxu0 %v66
    %110 = vmatprep.subr.mxu0 %v65
    %111 = vmatpush1.msra.mxu0 %v64
    %112 = vmatprep.subr.mxu0 %v63
    %113 = vmatpush1.msra.mxu0 %v62
    %114 = vmatprep.subr.mxu0 %v61
    %115 = vmatpush1.msra.mxu0 %v60
    %116 = vmatprep.subr.mxu0 %v59
    %117 = vmatpush1.msra.mxu0 %v58
    %118 = vmatprep.subr.mxu0 %v57
    %119 = vmatpush1.msra.mxu0 %v56
    %120 = vmatprep.subr.mxu0 %v55
    %121 = vmatpush1.msra.mxu0 %v54
    %122 = vmatprep.subr.mxu0 %v53
    %123 = vmatpush1.msra.mxu0 %v52
    %124 = vmatprep.subr.mxu0 %v51
    %125 = vmatpush1.msra.mxu0 %v50
    %126 = vmatprep.subr.mxu0 %v49
    %127 = vmatpush1.msra.mxu0 %v48
    %128 = vmatprep.subr.mxu0 %v47
    %129 = vmatpush1.msra.mxu0 %v46
    %130 = vmatprep.subr.mxu0 %v45
    %131 = vmatpush1.msra.mxu0 %v44
    %132 = vmatprep.subr.mxu0 %v43
    %133 = vmatpush1.msra.mxu0 %v42
    %134 = vmatprep.subr.mxu0 %v41
    %135 = vmatpush1.msra.mxu0 %v40
    %136 = vmatprep.subr.mxu0 %v103
    %137 = vmatpush2.msra.mxu0 %v102
    %138 = vmatprep.subr.mxu0 %v101
    %139 = vmatpush2.msra.mxu0 %v100
    %140 = vmatprep.subr.mxu0 %v99
    %141 = vmatpush2.msra.mxu0 %v98
    %142 = vmatprep.subr.mxu0 %v97
    %143 = vmatpush2.msra.mxu0 %v96
    %144 = vmatprep.subr.mxu0 %v95
    %145 = vmatpush2.msra.mxu0 %v94
    %146 = vmatprep.subr.mxu0 %v93
    %147 = vmatpush2.msra.mxu0 %v92
    %148 = vmatprep.subr.mxu0 %v91
    %149 = vmatpush2.msra.mxu0 %v90
    %150 = vmatprep.subr.mxu0 %v89
    %151 = vmatpush2.msra.mxu0 %v88
    %152 = vmatprep.subr.mxu0 %v87
    %153 = vmatpush2.msra.mxu0 %v86
    %154 = vmatprep.subr.mxu0 %v85
    %155 = vmatpush2.msra.mxu0 %v84
    %156 = vmatprep.subr.mxu0 %v83
    %157 = vmatpush2.msra.mxu0 %v82
    %158 = vmatprep.subr.mxu0 %v81
    %159 = vmatpush2.msra.mxu0 %v80
    %160 = vmatprep.subr.mxu0 %v79
    %161 = vmatpush2.msra.mxu0 %v78
    %162 = vmatprep.subr.mxu0 %v77
    %163 = vmatpush2.msra.mxu0 %v76
    %164 = vmatprep.subr.mxu0 %v75
    %165 = vmatpush2.msra.mxu0 %v74
    %166 = vmatprep.subr.mxu0 %v73
    %167 = vmatpush2.msra.mxu0 %v72
    %168 = vmatprep.mubr.f32.mxu0 %v39
    %169 = vmatmul.mubr.f32.gmra.mxu0 %v38
    %v170 = vpop.f32.mrf.mxu0
    %v171 = vadd.f32 0.0, %v170
    %v172 = vpop.f32.mrf.mxu0
    %v173 = vadd.f32 0.0, %v172
    %174 = vdwg.mxu0
    %v175 = vld [vmem:[%s1] sm:$0xff]
    %v176 = vld [vmem:[%s1 + $0x8] sm:$0xff]
    %vm177 = vcmask 64512
    %v179 = vsel %vm177, %v175, 0
    %v182 = vsel %vm177, %v176, 0
    %184 = vmatprep.subr.mxu0 0.0
    %185 = vmatpush1.msra.mxu0 0.0
    %186 = vmatprep.subr.mxu0 0.0
    %187 = vmatpush1.msra.mxu0 0.0
    %188 = vmatprep.subr.mxu0 0.0
    %189 = vmatpush1.msra.mxu0 0.0
    %190 = vmatprep.subr.mxu0 0.0
    %191 = vmatpush1.msra.mxu0 0.0
    %192 = vmatprep.subr.mxu0 0.0
    %193 = vmatpush1.msra.mxu0 0.0
    %194 = vmatprep.subr.mxu0 0.0
    %195 = vmatpush1.msra.mxu0 0.0
    %196 = vmatprep.subr.mxu0 0.0
    %197 = vmatpush1.msra.mxu0 0.0
    %198 = vmatprep.subr.mxu0 0.0
    %199 = vmatpush1.msra.mxu0 0.0
    %200 = vmatprep.subr.mxu0 0.0
    %201 = vmatpush1.msra.mxu0 0.0
    %202 = vmatprep.subr.mxu0 0.0
    %203 = vmatpush1.msra.mxu0 0.0
    %204 = vmatprep.subr.mxu0 0.0
    %205 = vmatpush1.msra.mxu0 0.0
    %206 = vmatprep.subr.mxu0 0.0
    %207 = vmatpush1.msra.mxu0 0.0
    %208 = vmatprep.subr.mxu0 0.0
    %209 = vmatpush1.msra.mxu0 0.0
    %210 = vmatprep.subr.mxu0 0.0
    %211 = vmatpush1.msra.mxu0 0.0
    %212 = vmatprep.subr.mxu0 0.0
    %213 = vmatpush1.msra.mxu0 0.0
    %214 = vmatprep.subr.mxu0 %v173
    %215 = vmatpush1.msra.mxu0 %v171
    %216 = vmatprep.subr.mxu0 0.0
    %217 = vmatpush2.msra.mxu0 0.0
    %218 = vmatprep.subr.mxu0 0.0
    %219 = vmatpush2.msra.mxu0 0.0
    %220 = vmatprep.subr.mxu0 0.0
    %221 = vmatpush2.msra.mxu0 0.0
    %222 = vmatprep.subr.mxu0 0.0
    %223 = vmatpush2.msra.mxu0 0.0
    %224 = vmatprep.subr.mxu0 0.0
    %225 = vmatpush2.msra.mxu0 0.0
    %226 = vmatprep.subr.mxu0 0.0
    %227 = vmatpush2.msra.mxu0 0.0
    %228 = vmatprep.subr.mxu0 0.0
    %229 = vmatpush2.msra.mxu0 0.0
    %230 = vmatprep.subr.mxu0 0.0
    %231 = vmatpush2.msra.mxu0 0.0
    %232 = vmatprep.subr.mxu0 0.0
    %233 = vmatpush2.msra.mxu0 0.0
    %234 = vmatprep.subr.mxu0 0.0
    %235 = vmatpush2.msra.mxu0 0.0
    %236 = vmatprep.subr.mxu0 0.0
    %237 = vmatpush2.msra.mxu0 0.0
    %238 = vmatprep.subr.mxu0 0.0
    %239 = vmatpush2.msra.mxu0 0.0
    %240 = vmatprep.subr.mxu0 0.0
    %241 = vmatpush2.msra.mxu0 0.0
    %242 = vmatprep.subr.mxu0 0.0
    %243 = vmatpush2.msra.mxu0 0.0
    %244 = vmatprep.subr.mxu0 0.0
    %245 = vmatpush2.msra.mxu0 0.0
    %246 = vmatprep.subr.mxu0 0.0
    %247 = vmatpush2.msra.mxu0 0.0
    %248 = vmatprep.mubr.f32.mxu0 0.0
    %249 = vmatmul.mubr.f32.gmra.mxu0 %v179
    %v250 = vpop.f32.mrf.mxu0
    %v251 = vadd.f32 0.0, %v250
    %v252 = vpop.f32.mrf.mxu0
    %v253 = vadd.f32 0.0, %v252
    %254 = vmatprep.mubr.f32.mxu0 0.0
    %255 = vmatmul.mubr.f32.gmra.mxu0 %v182
    %v256 = vpop.f32.mrf.mxu0
    %v257 = vadd.f32 0.0, %v256
    %v258 = vpop.f32.mrf.mxu0
    %v259 = vadd.f32 0.0, %v258
    %260 = vdwg.mxu0
    %v261 = vld [vmem:[%s3] sm:$0x3]
    %v263 = vlaneseq
    %v264 = vshrl.u32 %v263, 7
    %v265 = vsub.s32 0, %v264
    %v266 = vrot.slane %v261, %v265
    %v267 = vlaneseq
    %v268 = vshrl.u32 %v267, 7
    %v269 = vsub.s32 1, %v268
    %v270 = vrot.slane %v261, %v269
    %v273 = vmul.f32 %v251, %v266
    %v274 = vmul.f32 %v253, %v270
    %v275 = vld [vmem:[%s4] sm:$0x3]
    %v277 = vlaneseq
    %v278 = vshrl.u32 %v277, 7
    %v279 = vsub.s32 0, %v278
    %v280 = vrot.slane %v275, %v279
    %v281 = vlaneseq
    %v282 = vshrl.u32 %v281, 7
    %v283 = vsub.s32 1, %v282
    %v284 = vrot.slane %v275, %v283
    %v287 = vmul.f32 %v257, %v280
    %v288 = vmul.f32 %v259, %v284
    %v289 = vsub.f32 %v273, %v287
    %v290 = vsub.f32 %v274, %v288
    %v291 = vld [vmem:[%s5] sm:$0x3]
    %v293 = vlaneseq
    %v294 = vshrl.u32 %v293, 7
    %v295 = vsub.s32 0, %v294
    %v296 = vrot.slane %v291, %v295
    %v297 = vlaneseq
    %v298 = vshrl.u32 %v297, 7
    %v299 = vsub.s32 1, %v298
    %v300 = vrot.slane %v291, %v299
    %v303 = vadd.f32 %v289, %v296
    %v304 = vadd.f32 %v290, %v300
    %v305 = vmax.f32 %v303, 0.0
    %v306 = vmax.f32 %v304, 0.0
    %v307 = vld [vmem:[%s1] sm:$0xff]
    %v309 = vsel %vm177, %v307, 0
    %311 = vmatprep.subr.mxu0 0.0
    %312 = vmatpush1.msra.mxu0 0.0
    %313 = vmatprep.subr.mxu0 0.0
    %314 = vmatpush1.msra.mxu0 0.0
    %315 = vmatprep.subr.mxu0 0.0
    %316 = vmatpush1.msra.mxu0 0.0
    %317 = vmatprep.subr.mxu0 0.0
    %318 = vmatpush1.msra.mxu0 0.0
    %319 = vmatprep.subr.mxu0 0.0
    %320 = vmatpush1.msra.mxu0 0.0
    %321 = vmatprep.subr.mxu0 0.0
    %322 = vmatpush1.msra.mxu0 0.0
    %323 = vmatprep.subr.mxu0 0.0
    %324 = vmatpush1.msra.mxu0 0.0
    %325 = vmatprep.subr.mxu0 0.0
    %326 = vmatpush1.msra.mxu0 0.0
    %327 = vmatprep.subr.mxu0 0.0
    %328 = vmatpush1.msra.mxu0 0.0
    %329 = vmatprep.subr.mxu0 0.0
    %330 = vmatpush1.msra.mxu0 0.0
    %331 = vmatprep.subr.mxu0 0.0
    %332 = vmatpush1.msra.mxu0 0.0
    %333 = vmatprep.subr.mxu0 0.0
    %334 = vmatpush1.msra.mxu0 0.0
    %335 = vmatprep.subr.mxu0 0.0
    %336 = vmatpush1.msra.mxu0 0.0
    %337 = vmatprep.subr.mxu0 0.0
    %338 = vmatpush1.msra.mxu0 0.0
    %339 = vmatprep.subr.mxu0 0.0
    %340 = vmatpush1.msra.mxu0 0.0
    %341 = vmatprep.subr.mxu0 %v306
    %342 = vmatpush1.msra.mxu0 %v305
    %343 = vmatprep.subr.mxu0 0.0
    %344 = vmatpush2.msra.mxu0 0.0
    %345 = vmatprep.subr.mxu0 0.0
    %346 = vmatpush2.msra.mxu0 0.0
    %347 = vmatprep.subr.mxu0 0.0
    %348 = vmatpush2.msra.mxu0 0.0
    %349 = vmatprep.subr.mxu0 0.0
    %350 = vmatpush2.msra.mxu0 0.0
    %351 = vmatprep.subr.mxu0 0.0
    %352 = vmatpush2.msra.mxu0 0.0
    %353 = vmatprep.subr.mxu0 0.0
    %354 = vmatpush2.msra.mxu0 0.0
    %355 = vmatprep.subr.mxu0 0.0
    %356 = vmatpush2.msra.mxu0 0.0
    %357 = vmatprep.subr.mxu0 0.0
    %358 = vmatpush2.msra.mxu0 0.0
    %359 = vmatprep.subr.mxu0 0.0
    %360 = vmatpush2.msra.mxu0 0.0
    %361 = vmatprep.subr.mxu0 0.0
    %362 = vmatpush2.msra.mxu0 0.0
    %363 = vmatprep.subr.mxu0 0.0
    %364 = vmatpush2.msra.mxu0 0.0
    %365 = vmatprep.subr.mxu0 0.0
    %366 = vmatpush2.msra.mxu0 0.0
    %367 = vmatprep.subr.mxu0 0.0
    %368 = vmatpush2.msra.mxu0 0.0
    %369 = vmatprep.subr.mxu0 0.0
    %370 = vmatpush2.msra.mxu0 0.0
    %371 = vmatprep.subr.mxu0 0.0
    %372 = vmatpush2.msra.mxu0 0.0
    %373 = vmatprep.subr.mxu0 0.0
    %374 = vmatpush2.msra.mxu0 0.0
    %375 = vmatprep.mubr.f32.mxu0 0.0
    %376 = vmatmul.mubr.f32.gmra.mxu0 %v309
    %v377 = vpop.f32.mrf.mxu0
    %v378 = vadd.f32 0.0, %v377
    %v379 = vpop.f32.mrf.mxu0
    %v380 = vadd.f32 0.0, %v379
    %381 = vdwg.mxu0
    %382 = vst [vmem:[#allocation5] sm:$0xff] %v378
    %383 = vst [vmem:[#allocation5 + $0x8] sm:$0xff] %v380
    // Predicated region
    $region30: #{tpu_custom_call.1} parent=1 // pred_check
      _
    $region31: #{tpu_custom_call.1} parent=1 // pred_check_branch
      %385 = sbr.rel (0) target = $region33
    $region32: #{tpu_custom_call.1} parent=1 // pred_region
      %s387 = ssub.s32 256, 256
      %388 = vsyncadd [#allocation4], %s387
      %s390 = sshll.u32 [#allocation5], 4
      %s391 = int_to_ptr.vmem [resolvable:$true] %s390
      %393 = dma.vmem_to_hbm [thread:$0]  %s391, 256, %s6, [#allocation4]
    $region33: #{tpu_custom_call.1} parent=1 // pred_fallthru
      _
    // Predicated region
    $region34: #{tpu_custom_call.1} parent=1 // pred_check
      _
    $region35: #{tpu_custom_call.1} parent=1 // pred_check_branch
      %395 = sbr.rel (0) target = $region37
    $region36: #{tpu_custom_call.1} parent=1 // pred_region
      %396 = dma.done [#allocation4], 256
    $region37: #{tpu_custom_call.1} parent=1 // pred_fallthru
      _
    %397 = vsyncpa [#allocation3], 1
    %398 = vsyncpa [#allocation4], 1

// kernel: tpu_custom_call.1
$region0: #{tpu_custom_call.1}
  #allocation0 [shape = 'u32[]', space=smem, size = 0x4, offset = 0x4, fixed_abs, tag = 'smem constant byte address 0x4 - core index']
  #allocation1 [shape = 'u32[144,128]{1,0:T(1,128)}', space=vmem, size = 0x12000, scoped, tag = 'internal scratch']
  %s0 = inlined_call_operand.vmem [shape: f32[8,256], index: 0, kind: input, shape index: {}]
  %s1 = inlined_call_operand.vmem [shape: f32[16,8], index: 1, kind: input, shape index: {}]
  %s2 = inlined_call_operand.hbm [shape: f32[256,256], index: 2, kind: input, shape index: {}]
  %s3 = inlined_call_operand.vmem [shape: f32[1,256], index: 3, kind: input, shape index: {}]
  %s4 = inlined_call_operand.vmem [shape: f32[1,256], index: 4, kind: input, shape index: {}]
  %s5 = inlined_call_operand.vmem [shape: f32[1,256], index: 5, kind: input, shape index: {}]
  %s6 = inlined_call_operand.hbm [shape: f32[8,256], index: 6, kind: output, shape index: {}]
  %s7 = sld [smem:[#allocation0]]
  $region38: #{tpu_custom_call.1} parent=0
    _
  %s9 = ssub.s32 1, %s7
  %s10 = scalar_select 0, %s9, %s7
  $region1: #{tpu_custom_call.1} parent=0
    #allocation2 [shape = 'u8[262144]{0}', space=vmem, size = 0x40000, scoped, tag = 'input window, operand 2, single buffered']
    #allocation3 [shape = 's32[1]{0}', space=sflag, size = 0x4, scoped, tag = 'scoped memory for tpu_custom_call.1']
    #allocation4 [shape = 's32[1]{0}', space=sflag, size = 0x4, scoped, tag = 'scoped memory for tpu_custom_call.1']
    #allocation5 [shape = 'u8[8192]{0}', space=vmem, size = 0x2000, scoped, tag = 'output window, operand 0, single buffered']
    %11 = vsyncpa [#allocation3], 0
    %12 = vsyncpa [#allocation4], 0
    // Predicated region
    $region2: #{tpu_custom_call.1} parent=1 // pred_check
      _
    $region3: #{tpu_custom_call.1} parent=1 // pred_check_branch
      %14 = sbr.rel (0) target = $region5
    $region4: #{tpu_custom_call.1} parent=1 // pred_region
      _
    $region5: #{tpu_custom_call.1} parent=1 // pred_fallthru
      _
    // Predicated region
    $region6: #{tpu_custom_call.1} parent=1 // pred_check
      _
    $region7: #{tpu_custom_call.1} parent=1 // pred_check_branch
      %16 = sbr.rel (0) target = $region9
    $region8: #{tpu_custom_call.1} parent=1 // pred_region
      _
    $region9: #{tpu_custom_call.1} parent=1 // pred_fallthru
      _
    // Predicated region
    $region10: #{tpu_custom_call.1} parent=1 // pred_check
      _
    $region11: #{tpu_custom_call.1} parent=1 // pred_check_branch
      %18 = sbr.rel (0) target = $region13
    $region12: #{tpu_custom_call.1} parent=1 // pred_region
      %s20 = ssub.s32 8192, 8192
      %21 = vsyncadd [#allocation3], %s20
      %s22 = sshll.u32 [#allocation2], 4
      %s23 = int_to_ptr.vmem [resolvable:$true] %s22
      %28 = dma.hbm_to_vmem [thread:$0]  %s2, 8192, %s23, [#allocation3], 256, 256, 16
    $region13: #{tpu_custom_call.1} parent=1 // pred_fallthru
      _
    // Predicated region
    $region14: #{tpu_custom_call.1} parent=1 // pred_check
      _
    $region15: #{tpu_custom_call.1} parent=1 // pred_check_branch
      %30 = sbr.rel (0) target = $region17
    $region16: #{tpu_custom_call.1} parent=1 // pred_region
      _
    $region17: #{tpu_custom_call.1} parent=1 // pred_fallthru
      _
    // Predicated region
    $region18: #{tpu_custom_call.1} parent=1 // pred_check
      _
    $region19: #{tpu_custom_call.1} parent=1 // pred_check_branch
      %32 = sbr.rel (0) target = $region21
    $region20: #{tpu_custom_call.1} parent=1 // pred_region
      _
    $region21: #{tpu_custom_call.1} parent=1 // pred_fallthru
      _
    // Predicated region
    $region22: #{tpu_custom_call.1} parent=1 // pred_check
      _
    $region23: #{tpu_custom_call.1} parent=1 // pred_check_branch
      %34 = sbr.rel (0) target = $region25
    $region24: #{tpu_custom_call.1} parent=1 // pred_region
      _
    $region25: #{tpu_custom_call.1} parent=1 // pred_fallthru
      _
    // Predicated region
    $region26: #{tpu_custom_call.1} parent=1 // pred_check
      _
    $region27: #{tpu_custom_call.1} parent=1 // pred_check_branch
      %36 = sbr.rel (0) target = $region29
    $region28: #{tpu_custom_call.1} parent=1 // pred_region
      %37 = dma.done [#allocation3], 8192
    $region29: #{tpu_custom_call.1} parent=1 // pred_fallthru
      _
    %v38 = vld [vmem:[%s0] sm:$0xff]
    %v39 = vld [vmem:[%s0 + $0x8] sm:$0xff]
    %v40 = vld [vmem:[#allocation2] sm:$0xff]
    %v41 = vld [vmem:[#allocation2 + $0x8] sm:$0xff]
    %v42 = vld [vmem:[#allocation2 + $0x10] sm:$0xff]
    %v43 = vld [vmem:[#allocation2 + $0x18] sm:$0xff]
    %v44 = vld [vmem:[#allocation2 + $0x20] sm:$0xff]
    %v45 = vld [vmem:[#allocation2 + $0x28] sm:$0xff]
    %v46 = vld [vmem:[#allocation2 + $0x30] sm:$0xff]
    %v47 = vld [vmem:[#allocation2 + $0x38] sm:$0xff]
    %v48 = vld [vmem:[#allocation2 + $0x40] sm:$0xff]
    %v49 = vld [vmem:[#allocation2 + $0x48] sm:$0xff]
    %v50 = vld [vmem:[#allocation2 + $0x50] sm:$0xff]
    %v51 = vld [vmem:[#allocation2 + $0x58] sm:$0xff]
    %v52 = vld [vmem:[#allocation2 + $0x60] sm:$0xff]
    %v53 = vld [vmem:[#allocation2 + $0x68] sm:$0xff]
    %v54 = vld [vmem:[#allocation2 + $0x70] sm:$0xff]
    %v55 = vld [vmem:[#allocation2 + $0x78] sm:$0xff]
    %v56 = vld [vmem:[#allocation2 + $0x80] sm:$0xff]
    %v57 = vld [vmem:[#allocation2 + $0x88] sm:$0xff]
    %v58 = vld [vmem:[#allocation2 + $0x90] sm:$0xff]
    %v59 = vld [vmem:[#allocation2 + $0x98] sm:$0xff]
    %v60 = vld [vmem:[#allocation2 + $0xa0] sm:$0xff]
    %v61 = vld [vmem:[#allocation2 + $0xa8] sm:$0xff]
    %v62 = vld [vmem:[#allocation2 + $0xb0] sm:$0xff]
    %v63 = vld [vmem:[#allocation2 + $0xb8] sm:$0xff]
    %v64 = vld [vmem:[#allocation2 + $0xc0] sm:$0xff]
    %v65 = vld [vmem:[#allocation2 + $0xc8] sm:$0xff]
    %v66 = vld [vmem:[#allocation2 + $0xd0] sm:$0xff]
    %v67 = vld [vmem:[#allocation2 + $0xd8] sm:$0xff]
    %v68 = vld [vmem:[#allocation2 + $0xe0] sm:$0xff]
    %v69 = vld [vmem:[#allocation2 + $0xe8] sm:$0xff]
    %v70 = vld [vmem:[#allocation2 + $0xf0] sm:$0xff]
    %v71 = vld [vmem:[#allocation2 + $0xf8] sm:$0xff]
    %v72 = vld [vmem:[#allocation2 + $0x100] sm:$0xff]
    %v73 = vld [vmem:[#allocation2 + $0x108] sm:$0xff]
    %v74 = vld [vmem:[#allocation2 + $0x110] sm:$0xff]
    %v75 = vld [vmem:[#allocation2 + $0x118] sm:$0xff]
    %v76 = vld [vmem:[#allocation2 + $0x120] sm:$0xff]
    %v77 = vld [vmem:[#allocation2 + $0x128] sm:$0xff]
    %v78 = vld [vmem:[#allocation2 + $0x130] sm:$0xff]
    %v79 = vld [vmem:[#allocation2 + $0x138] sm:$0xff]
    %v80 = vld [vmem:[#allocation2 + $0x140] sm:$0xff]
    %v81 = vld [vmem:[#allocation2 + $0x148] sm:$0xff]
    %v82 = vld [vmem:[#allocation2 + $0x150] sm:$0xff]
    %v83 = vld [vmem:[#allocation2 + $0x158] sm:$0xff]
    %v84 = vld [vmem:[#allocation2 + $0x160] sm:$0xff]
    %v85 = vld [vmem:[#allocation2 + $0x168] sm:$0xff]
    %v86 = vld [vmem:[#allocation2 + $0x170] sm:$0xff]
    %v87 = vld [vmem:[#allocation2 + $0x178] sm:$0xff]
    %v88 = vld [vmem:[#allocation2 + $0x180] sm:$0xff]
    %v89 = vld [vmem:[#allocation2 + $0x188] sm:$0xff]
    %v90 = vld [vmem:[#allocation2 + $0x190] sm:$0xff]
    %v91 = vld [vmem:[#allocation2 + $0x198] sm:$0xff]
    %v92 = vld [vmem:[#allocation2 + $0x1a0] sm:$0xff]
    %v93 = vld [vmem:[#allocation2 + $0x1a8] sm:$0xff]
    %v94 = vld [vmem:[#allocation2 + $0x1b0] sm:$0xff]
    %v95 = vld [vmem:[#allocation2 + $0x1b8] sm:$0xff]
    %v96 = vld [vmem:[#allocation2 + $0x1c0] sm:$0xff]
    %v97 = vld [vmem:[#allocation2 + $0x1c8] sm:$0xff]
    %v98 = vld [vmem:[#allocation2 + $0x1d0] sm:$0xff]
    %v99 = vld [vmem:[#allocation2 + $0x1d8] sm:$0xff]
    %v100 = vld [vmem:[#allocation2 + $0x1e0] sm:$0xff]
    %v101 = vld [vmem:[#allocation2 + $0x1e8] sm:$0xff]
    %v102 = vld [vmem:[#allocation2 + $0x1f0] sm:$0xff]
    %v103 = vld [vmem:[#allocation2 + $0x1f8] sm:$0xff]
    %104 = vmatprep.subr.mxu0 %v71
    %105 = vmatpush1.msra.mxu0 %v70
    %106 = vmatprep.subr.mxu0 %v69
    %107 = vmatpush1.msra.mxu0 %v68
    %108 = vmatprep.subr.mxu0 %v67
    %109 = vmatpush1.msra.mxu0 %v66
    %110 = vmatprep.subr.mxu0 %v65
    %111 = vmatpush1.msra.mxu0 %v64
    %112 = vmatprep.subr.mxu0 %v63
    %113 = vmatpush1.msra.mxu0 %v62
    %114 = vmatprep.subr.mxu0 %v61
    %115 = vmatpush1.msra.mxu0 %v60
    %116 = vmatprep.subr.mxu0 %v59
    %117 = vmatpush1.msra.mxu0 %v58
    %118 = vmatprep.subr.mxu0 %v57
    %119 = vmatpush1.msra.mxu0 %v56
    %120 = vmatprep.subr.mxu0 %v55
    %121 = vmatpush1.msra.mxu0 %v54
    %122 = vmatprep.subr.mxu0 %v53
    %123 = vmatpush1.msra.mxu0 %v52
    %124 = vmatprep.subr.mxu0 %v51
    %125 = vmatpush1.msra.mxu0 %v50
    %126 = vmatprep.subr.mxu0 %v49
    %127 = vmatpush1.msra.mxu0 %v48
    %128 = vmatprep.subr.mxu0 %v47
    %129 = vmatpush1.msra.mxu0 %v46
    %130 = vmatprep.subr.mxu0 %v45
    %131 = vmatpush1.msra.mxu0 %v44
    %132 = vmatprep.subr.mxu0 %v43
    %133 = vmatpush1.msra.mxu0 %v42
    %134 = vmatprep.subr.mxu0 %v41
    %135 = vmatpush1.msra.mxu0 %v40
    %136 = vmatprep.subr.mxu0 %v103
    %137 = vmatpush2.msra.mxu0 %v102
    %138 = vmatprep.subr.mxu0 %v101
    %139 = vmatpush2.msra.mxu0 %v100
    %140 = vmatprep.subr.mxu0 %v99
    %141 = vmatpush2.msra.mxu0 %v98
    %142 = vmatprep.subr.mxu0 %v97
    %143 = vmatpush2.msra.mxu0 %v96
    %144 = vmatprep.subr.mxu0 %v95
    %145 = vmatpush2.msra.mxu0 %v94
    %146 = vmatprep.subr.mxu0 %v93
    %147 = vmatpush2.msra.mxu0 %v92
    %148 = vmatprep.subr.mxu0 %v91
    %149 = vmatpush2.msra.mxu0 %v90
    %150 = vmatprep.subr.mxu0 %v89
    %151 = vmatpush2.msra.mxu0 %v88
    %152 = vmatprep.subr.mxu0 %v87
    %153 = vmatpush2.msra.mxu0 %v86
    %154 = vmatprep.subr.mxu0 %v85
    %155 = vmatpush2.msra.mxu0 %v84
    %156 = vmatprep.subr.mxu0 %v83
    %157 = vmatpush2.msra.mxu0 %v82
    %158 = vmatprep.subr.mxu0 %v81
    %159 = vmatpush2.msra.mxu0 %v80
    %160 = vmatprep.subr.mxu0 %v79
    %161 = vmatpush2.msra.mxu0 %v78
    %162 = vmatprep.subr.mxu0 %v77
    %163 = vmatpush2.msra.mxu0 %v76
    %164 = vmatprep.subr.mxu0 %v75
    %165 = vmatpush2.msra.mxu0 %v74
    %166 = vmatprep.subr.mxu0 %v73
    %167 = vmatpush2.msra.mxu0 %v72
    %168 = vmatprep.mubr.f32.mxu0 %v39
    %169 = vmatmul.mubr.f32.gmra.mxu0 %v38
    %v170 = vpop.f32.mrf.mxu0
    %v171 = vadd.f32 0.0, %v170
    %v172 = vpop.f32.mrf.mxu0
    %v173 = vadd.f32 0.0, %v172
    %174 = vdwg.mxu0
    %v175 = vld [vmem:[%s1] sm:$0xff]
    %v176 = vld [vmem:[%s1 + $0x8] sm:$0xff]
    %vm177 = vcmask 64512
    %v179 = vsel %vm177, %v175, 0
    %v182 = vsel %vm177, %v176, 0
    %184 = vmatprep.subr.mxu0 0.0
    %185 = vmatpush1.msra.mxu0 0.0
    %186 = vmatprep.subr.mxu0 0.0
    %187 = vmatpush1.msra.mxu0 0.0
    %188 = vmatprep.subr.mxu0 0.0
    %189 = vmatpush1.msra.mxu0 0.0
    %190 = vmatprep.subr.mxu0 0.0
    %191 = vmatpush1.msra.mxu0 0.0
    %192 = vmatprep.subr.mxu0 0.0
    %193 = vmatpush1.msra.mxu0 0.0
    %194 = vmatprep.subr.mxu0 0.0
    %195 = vmatpush1.msra.mxu0 0.0
    %196 = vmatprep.subr.mxu0 0.0
    %197 = vmatpush1.msra.mxu0 0.0
    %198 = vmatprep.subr.mxu0 0.0
    %199 = vmatpush1.msra.mxu0 0.0
    %200 = vmatprep.subr.mxu0 0.0
    %201 = vmatpush1.msra.mxu0 0.0
    %202 = vmatprep.subr.mxu0 0.0
    %203 = vmatpush1.msra.mxu0 0.0
    %204 = vmatprep.subr.mxu0 0.0
    %205 = vmatpush1.msra.mxu0 0.0
    %206 = vmatprep.subr.mxu0 0.0
    %207 = vmatpush1.msra.mxu0 0.0
    %208 = vmatprep.subr.mxu0 0.0
    %209 = vmatpush1.msra.mxu0 0.0
    %210 = vmatprep.subr.mxu0 0.0
    %211 = vmatpush1.msra.mxu0 0.0
    %212 = vmatprep.subr.mxu0 0.0
    %213 = vmatpush1.msra.mxu0 0.0
    %214 = vmatprep.subr.mxu0 %v173
    %215 = vmatpush1.msra.mxu0 %v171
    %216 = vmatprep.subr.mxu0 0.0
    %217 = vmatpush2.msra.mxu0 0.0
    %218 = vmatprep.subr.mxu0 0.0
    %219 = vmatpush2.msra.mxu0 0.0
    %220 = vmatprep.subr.mxu0 0.0
    %221 = vmatpush2.msra.mxu0 0.0
    %222 = vmatprep.subr.mxu0 0.0
    %223 = vmatpush2.msra.mxu0 0.0
    %224 = vmatprep.subr.mxu0 0.0
    %225 = vmatpush2.msra.mxu0 0.0
    %226 = vmatprep.subr.mxu0 0.0
    %227 = vmatpush2.msra.mxu0 0.0
    %228 = vmatprep.subr.mxu0 0.0
    %229 = vmatpush2.msra.mxu0 0.0
    %230 = vmatprep.subr.mxu0 0.0
    %231 = vmatpush2.msra.mxu0 0.0
    %232 = vmatprep.subr.mxu0 0.0
    %233 = vmatpush2.msra.mxu0 0.0
    %234 = vmatprep.subr.mxu0 0.0
    %235 = vmatpush2.msra.mxu0 0.0
    %236 = vmatprep.subr.mxu0 0.0
    %237 = vmatpush2.msra.mxu0 0.0
    %238 = vmatprep.subr.mxu0 0.0
    %239 = vmatpush2.msra.mxu0 0.0
    %240 = vmatprep.subr.mxu0 0.0
    %241 = vmatpush2.msra.mxu0 0.0
    %242 = vmatprep.subr.mxu0 0.0
    %243 = vmatpush2.msra.mxu0 0.0
    %244 = vmatprep.subr.mxu0 0.0
    %245 = vmatpush2.msra.mxu0 0.0
    %246 = vmatprep.subr.mxu0 0.0
    %247 = vmatpush2.msra.mxu0 0.0
    %248 = vmatprep.mubr.f32.mxu0 0.0
    %249 = vmatmul.mubr.f32.gmra.mxu0 %v179
    %v250 = vpop.f32.mrf.mxu0
    %v251 = vadd.f32 0.0, %v250
    %v252 = vpop.f32.mrf.mxu0
    %v253 = vadd.f32 0.0, %v252
    %254 = vmatprep.mubr.f32.mxu0 0.0
    %255 = vmatmul.mubr.f32.gmra.mxu0 %v182
    %v256 = vpop.f32.mrf.mxu0
    %v257 = vadd.f32 0.0, %v256
    %v258 = vpop.f32.mrf.mxu0
    %v259 = vadd.f32 0.0, %v258
    %260 = vdwg.mxu0
    %v261 = vld [vmem:[%s3] sm:$0x3]
    %v263 = vlaneseq
    %v264 = vshrl.u32 %v263, 7
    %v265 = vsub.s32 0, %v264
    %v266 = vrot.slane %v261, %v265
    %v267 = vlaneseq
    %v268 = vshrl.u32 %v267, 7
    %v269 = vsub.s32 1, %v268
    %v270 = vrot.slane %v261, %v269
    %v273 = vmul.f32 %v251, %v266
    %v274 = vmul.f32 %v253, %v270
    %v275 = vld [vmem:[%s4] sm:$0x3]
    %v277 = vlaneseq
    %v278 = vshrl.u32 %v277, 7
    %v279 = vsub.s32 0, %v278
    %v280 = vrot.slane %v275, %v279
    %v281 = vlaneseq
    %v282 = vshrl.u32 %v281, 7
    %v283 = vsub.s32 1, %v282
    %v284 = vrot.slane %v275, %v283
    %v287 = vmul.f32 %v257, %v280
    %v288 = vmul.f32 %v259, %v284
    %v289 = vsub.f32 %v273, %v287
    %v290 = vsub.f32 %v274, %v288
    %v291 = vld [vmem:[%s5] sm:$0x3]
    %v293 = vlaneseq
    %v294 = vshrl.u32 %v293, 7
    %v295 = vsub.s32 0, %v294
    %v296 = vrot.slane %v291, %v295
    %v297 = vlaneseq
    %v298 = vshrl.u32 %v297, 7
    %v299 = vsub.s32 1, %v298
    %v300 = vrot.slane %v291, %v299
    %v303 = vadd.f32 %v289, %v296
    %v304 = vadd.f32 %v290, %v300
    %v305 = vmax.f32 %v303, 0.0
    %v306 = vmax.f32 %v304, 0.0
    %v307 = vld [vmem:[%s1] sm:$0xff]
    %v309 = vsel %vm177, %v307, 0
    %311 = vmatprep.subr.mxu0 0.0
    %312 = vmatpush1.msra.mxu0 0.0
    %313 = vmatprep.subr.mxu0 0.0
    %314 = vmatpush1.msra.mxu0 0.0
    %315 = vmatprep.subr.mxu0 0.0
    %316 = vmatpush1.msra.mxu0 0.0
    %317 = vmatprep.subr.mxu0 0.0
    %318 = vmatpush1.msra.mxu0 0.0
    %319 = vmatprep.subr.mxu0 0.0
    %320 = vmatpush1.msra.mxu0 0.0
    %321 = vmatprep.subr.mxu0 0.0
    %322 = vmatpush1.msra.mxu0 0.0
    %323 = vmatprep.subr.mxu0 0.0
    %324 = vmatpush1.msra.mxu0 0.0
    %325 = vmatprep.subr.mxu0 0.0
    %326 = vmatpush1.msra.mxu0 0.0
    %327 = vmatprep.subr.mxu0 0.0
    %328 = vmatpush1.msra.mxu0 0.0
    %329 = vmatprep.subr.mxu0 0.0
    %330 = vmatpush1.msra.mxu0 0.0
    %331 = vmatprep.subr.mxu0 0.0
    %332 = vmatpush1.msra.mxu0 0.0
    %333 = vmatprep.subr.mxu0 0.0
    %334 = vmatpush1.msra.mxu0 0.0
    %335 = vmatprep.subr.mxu0 0.0
    %336 = vmatpush1.msra.mxu0 0.0
    %337 = vmatprep.subr.mxu0 0.0
    %338 = vmatpush1.msra.mxu0 0.0
    %339 = vmatprep.subr.mxu0 0.0
    %340 = vmatpush1.msra.mxu0 0.0
    %341 = vmatprep.subr.mxu0 %v306
    %342 = vmatpush1.msra.mxu0 %v305
    %343 = vmatprep.subr.mxu0 0.0
    %344 = vmatpush2.msra.mxu0 0.0
    %345 = vmatprep.subr.mxu0 0.0
    %346 = vmatpush2.msra.mxu0 0.0
    %347 = vmatprep.subr.mxu0 0.0
    %348 = vmatpush2.msra.mxu0 0.0
    %349 = vmatprep.subr.mxu0 0.0
    %350 = vmatpush2.msra.mxu0 0.0
    %351 = vmatprep.subr.mxu0 0.0
    %352 = vmatpush2.msra.mxu0 0.0
    %353 = vmatprep.subr.mxu0 0.0
    %354 = vmatpush2.msra.mxu0 0.0
    %355 = vmatprep.subr.mxu0 0.0
    %356 = vmatpush2.msra.mxu0 0.0
    %357 = vmatprep.subr.mxu0 0.0
    %358 = vmatpush2.msra.mxu0 0.0
    %359 = vmatprep.subr.mxu0 0.0
    %360 = vmatpush2.msra.mxu0 0.0
    %361 = vmatprep.subr.mxu0 0.0
    %362 = vmatpush2.msra.mxu0 0.0
    %363 = vmatprep.subr.mxu0 0.0
    %364 = vmatpush2.msra.mxu0 0.0
    %365 = vmatprep.subr.mxu0 0.0
    %366 = vmatpush2.msra.mxu0 0.0
    %367 = vmatprep.subr.mxu0 0.0
    %368 = vmatpush2.msra.mxu0 0.0
    %369 = vmatprep.subr.mxu0 0.0
    %370 = vmatpush2.msra.mxu0 0.0
    %371 = vmatprep.subr.mxu0 0.0
    %372 = vmatpush2.msra.mxu0 0.0
    %373 = vmatprep.subr.mxu0 0.0
    %374 = vmatpush2.msra.mxu0 0.0
    %375 = vmatprep.mubr.f32.mxu0 0.0
    %376 = vmatmul.mubr.f32.gmra.mxu0 %v309
    %v377 = vpop.f32.mrf.mxu0
    %v378 = vadd.f32 0.0, %v377
    %v379 = vpop.f32.mrf.mxu0
    %v380 = vadd.f32 0.0, %v379
    %381 = vdwg.mxu0
    %382 = vst [vmem:[#allocation5] sm:$0xff] %v378
    %383 = vst [vmem:[#allocation5 + $0x8] sm:$0xff] %v380
    // Predicated region
    $region30: #{tpu_custom_call.1} parent=1 // pred_check
      _
    $region31: #{tpu_custom_call.1} parent=1 // pred_check_branch
      %385 = sbr.rel (0) target = $region33
    $region32: #{tpu_custom_call.1} parent=1 // pred_region
      %s387 = ssub.s32 256, 256
      %388 = vsyncadd [#allocation4], %s387
      %s390 = sshll.u32 [#allocation5], 4
      %s391 = int_to_ptr.vmem [resolvable:$true] %s390
      %393 = dma.vmem_to_hbm [thread:$0]  %s391, 256, %s6, [#allocation4]
    $region33: #{tpu_custom_call.1} parent=1 // pred_fallthru
      _
    // Predicated region
    $region34: #{tpu_custom_call.1} parent=1 // pred_check
      _
    $region35: #{tpu_custom_call.1} parent=1 // pred_check_branch
      %395 = sbr.rel (0) target = $region37
    $region36: #{tpu_custom_call.1} parent=1 // pred_region
      %396 = dma.done [#allocation4], 256
    $region37: #{tpu_custom_call.1} parent=1 // pred_fallthru
      _
    %397 = vsyncpa [#allocation3], 1
    %398 = vsyncpa [#allocation4], 1

</llo_original>
